<compile_context>
chip_gen: v7x
topology: tpu7x:2x2x1
jax: 0.10.0
libtpu: 0.0.40
codegen_flags: <defaults>
</compile_context>

<pallas_src>
import functools

import jax
import jax.numpy as jnp
import numpy as np
from jax.experimental import pallas as pl
from jax.experimental.pallas import tpu as pltpu

EPS = 1e-5  # PyTorch BatchNorm2d default eps


def basic_block_kernel(x_ref, w1_ref, w2_ref, g1_ref, beta1_ref,
                       g2_ref, beta2_ref, sel_ref, selT_ref,
                       out_ref, patch_ref, *, n_imgs, pairs):
    """Fused BasicBlock body (row-pair-packed, lane-dense layout).

    x_ref     : (M, L)     input row-pairs, f32.  M = n_imgs * pairs,
                           L = 2*W*C lanes, lane = (row-in-pair, x, c).
    w*_ref    : (3*L, L)   block-banded conv weights (K-concat of the three
                           row-pair taps), MXU compute dtype (f32 or bf16).
    g*/beta*  : (1, C)     BN gamma / beta, f32.
    sel_ref   : (L, C)     0/1 selector lane -> channel (per-channel reduce).
    selT_ref  : (C, L)     0/1 selector channel -> lane (broadcast).
    out_ref   : (M, L)     output row-pairs, f32 (lane-dense unmasked stores).
    patch_ref : (M, 3*L)   VMEM scratch, compute dtype: K-concatenated conv
                           operand [pair-1 | pair | pair+1].
    """
    M, L = x_ref.shape
    C = g1_ref.shape[-1]
    elems = M * (L // C)            # elements per channel for batch statistics
    cdt = w1_ref.dtype              # MXU compute dtype (bf16 on v6e/v7x)

    sel = sel_ref[...]
    selT = selT_ref[...]

    def write_patch(act_f32):
        # Build the K-concatenated conv operand; cast ONCE here (not per tap).
        # The halo rows (pair above the first pair / below the last pair of
        # each image) were zeroed once below and are never rewritten, so they
        # stay valid for both convs.
        a = act_f32.astype(cdt)
        patch_ref[:, L:2 * L] = a                         # center pair
        for n in range(n_imgs):                           # shifted taps, per image
            r0 = n * pairs
            patch_ref[r0 + 1:r0 + pairs, 0:L] = a[r0:r0 + pairs - 1]          # pair-1
            patch_ref[r0:r0 + pairs - 1, 2 * L:3 * L] = a[r0 + 1:r0 + pairs]  # pair+1

    def conv_bn(w_ref, g_ref, beta_ref):
        # 3x3 conv == ONE lane-dense MXU matmul: (M, 3L) x (3L, L), K = 3*L.
        acc = jnp.dot(patch_ref[...], w_ref[...],
                      preferred_element_type=jnp.float32)            # (M,L) f32
        # Training-mode batch statistics, all f32.  Per-channel reduce /
        # broadcast over the interleaved (r, x, c) lane axis uses tiny constant
        # selector matmuls; sum and sum-of-squares share one MXU push.
        # NOTE: single-pass var = E[x^2]-E[x]^2; fine at these magnitudes.
        row_sum = jnp.sum(acc, axis=0, keepdims=True)                # (1, L)
        row_sq = jnp.sum(acc * acc, axis=0, keepdims=True)           # (1, L)
        stats = jnp.dot(jnp.concatenate([row_sum, row_sq], axis=0), sel,
                        preferred_element_type=jnp.float32) / elems  # (2, C)
        mean = stats[0:1]
        var = stats[1:2] - mean * mean
        scale = g_ref[...] * jax.lax.rsqrt(var + EPS)                # (1, C)
        shift = beta_ref[...] - mean * scale                         # (1, C)
        ss = jnp.dot(jnp.concatenate([scale, shift], axis=0), selT,
                     preferred_element_type=jnp.float32)             # (2, L)
        return acc * ss[0:1] + ss[1:2]

    # Zero ONLY the one-pair halo slices, once (valid for both convs).
    zero_row = jnp.zeros((1, L), cdt)
    for n in range(n_imgs):
        patch_ref[n * pairs:n * pairs + 1, 0:L] = zero_row
        patch_ref[(n + 1) * pairs - 1:(n + 1) * pairs, 2 * L:3 * L] = zero_row

    x = x_ref[...]

    # ---- conv1 -> bn1 -> relu ----
    write_patch(x)
    out1 = jnp.maximum(conv_bn(w1_ref, g1_ref, beta1_ref), 0.0)

    # ---- conv2 -> bn2 ----
    write_patch(out1)
    out2 = conv_bn(w2_ref, g2_ref, beta2_ref)

    # ---- identity shortcut (from the already-resident input) + final relu ----
    out_ref[...] = jnp.maximum(out2 + x, 0.0).astype(out_ref.dtype)


def _pair_band_weights(w_hwio, W):
    """HWIO (3,3,Cin,Cout) -> (3*L, L) block-banded matrix, L = 2*W*C.

    B[d*L + (r_in*W + x_in)*Cin + ci, (r_out*W + x_out)*Cout + co]
        = w[2*(d-1) + r_in - r_out + 1, x_in - x_out + 1, ci, co]
    whenever both kernel offsets lie in [0, 3); out-of-range taps (W zero
    padding and the one-pair row halo) are dropped, so the kernel needs no
    W halo at all.
    TODO(synk): at ResNet scale (large W*C) switch to W-tiled block bands or
    per-tap (N*H*W, Cin) x (Cin, Cout) matmuls -- dense bands are O((W*C)^2).
    """
    w = np.asarray(w_hwio, np.float32)
    _, _, Cin, Cout = w.shape
    L_in, L_out = 2 * W * Cin, 2 * W * Cout
    B = np.zeros((3, L_in, L_out), np.float32)
    for d in range(3):                       # input row-pair offset d - 1
        for r_in in range(2):
            for r_out in range(2):
                ky = 2 * (d - 1) + r_in - r_out + 1
                if not 0 <= ky <= 2:
                    continue
                for x_out in range(W):
                    for kx in range(3):
                        x_in = x_out + kx - 1
                        if not 0 <= x_in < W:
                            continue
                        B[d,
                          (r_in * W + x_in) * Cin:(r_in * W + x_in + 1) * Cin,
                          (r_out * W + x_out) * Cout:(r_out * W + x_out + 1) * Cout] \
                            = w[ky, kx]
    return jnp.asarray(B.reshape(3 * L_in, L_out))


def prepare_basic_block_params(w1, g1, b1, w2, g2, b2, W, *,
                               compute_dtype=jnp.float32):
    """Build banded weights / selectors / BN params ONCE (hoist out of the
    per-step path -- they do not depend on the activations)."""
    C = w1.shape[-1]
    L = 2 * W * C
    assert L % 128 == 0, "row-pair lane width must be a multiple of 128"
    eye = jnp.eye(C, dtype=jnp.float32)
    return dict(
        w1b=_pair_band_weights(w1, W).astype(compute_dtype),
        w2b=_pair_band_weights(w2, W).astype(compute_dtype),
        g1=jnp.asarray(g1, jnp.float32).reshape(1, C),
        b1=jnp.asarray(b1, jnp.float32).reshape(1, C),
        g2=jnp.asarray(g2, jnp.float32).reshape(1, C),
        b2=jnp.asarray(b2, jnp.float32).reshape(1, C),
        sel=jnp.tile(eye, (2 * W, 1)),      # (L, C): lane -> channel reduce
        selT=jnp.tile(eye, (1, 2 * W)),     # (C, L): channel -> lane broadcast
    )


def basic_block_rows(x_rows, params, *, n_imgs, pairs):
    """Run the fused kernel on already row-pair-packed activations (M, L)."""
    M, L = x_rows.shape
    cdt = params["w1b"].dtype
    kernel = functools.partial(basic_block_kernel, n_imgs=n_imgs, pairs=pairs)
    vmem = pl.BlockSpec(memory_space=pltpu.MemorySpace.VMEM)
    return pl.pallas_call(
        kernel,
        out_shape=jax.ShapeDtypeStruct((M, L), jnp.float32),
        in_specs=[vmem] * 9,
        out_specs=vmem,
        scratch_shapes=[pltpu.VMEM((M, 3 * L), cdt)],
        compiler_params=pltpu.CompilerParams(
            # Tiny footprint here; explicit limit keeps headroom on v7x (64 MiB
            # physical VMEM) as well as v5e/v6e.
            vmem_limit_bytes=32 * 1024 * 1024),
    )(x_rows, params["w1b"], params["w2b"], params["g1"], params["b1"],
      params["g2"], params["b2"], params["sel"], params["selT"])


def basic_block(x_nchw, w1, g1, b1, w2, g2, b2, *, stride=1,
                compute_dtype=jnp.float32):
    """Fused BasicBlock forward.  x_nchw: (N, Cin, H, W) f32; conv weights HWIO.

    compute_dtype: dtype of the conv MXU operands (use jnp.bfloat16 for the
    fast MXU path on v6e/v7x; BN stats / elementwise work stay f32).
    """
    # TODO(synk): only the identity-shortcut configuration (stride=1,
    # in_channel == channel) is implemented; option 'A' subsampled / option 'B'
    # 1x1-conv shortcuts are not wired up.
    assert stride == 1, "stride != 1 not implemented"
    N, Cin, H, W = x_nchw.shape
    C = w1.shape[-1]
    assert Cin == C, "non-identity shortcut not implemented"
    assert H % 2 == 0 and (2 * W * C) % 128 == 0, \
        "toy layout requires even H and 2*W*C % 128 == 0"
    pairs = H // 2
    L = 2 * W * C

    # TODO(synk): in a full network, keep activations in this packed layout
    # across layers and call prepare_basic_block_params once at init instead
    # of per call.
    params = prepare_basic_block_params(w1, g1, b1, w2, g2, b2, W,
                                        compute_dtype=compute_dtype)

    # NCHW -> NHWC -> pack two rows per 128-wide lane block: (N*H/2, 2*W*C).
    x_rows = jnp.transpose(x_nchw, (0, 2, 3, 1)).astype(jnp.float32)
    x_rows = x_rows.reshape(N * pairs, L)

    out_rows = basic_block_rows(x_rows, params, n_imgs=N, pairs=pairs)

    out_nhwc = out_rows.reshape(N, H, W, C)
    return jnp.transpose(out_nhwc, (0, 3, 1, 2))        # back to NCHW


def reference_basic_block(x_nchw, w1, g1, b1, w2, g2, b2):
    """Pure-JAX reference matching PyTorch BasicBlock.forward (training-mode BN)."""
    x = jnp.transpose(x_nchw, (0, 2, 3, 1))

    def conv(y, w):
        return jax.lax.conv_general_dilated(
            y, w, window_strides=(1, 1), padding="SAME",
            dimension_numbers=("NHWC", "HWIO", "NHWC"))

    def bn(y, g, b):
        m = jnp.mean(y, axis=(0, 1, 2), keepdims=True)
        v = jnp.mean((y - m) ** 2, axis=(0, 1, 2), keepdims=True)
        return (y - m) * jax.lax.rsqrt(v + EPS) * g + b

    out = jax.nn.relu(bn(conv(x, w1), g1, b1))
    out = bn(conv(out, w2), g2, b2)
    out = jax.nn.relu(out + x)
    return jnp.transpose(out, (0, 3, 1, 2))


if __name__ == "__main__":
    # Small config consistent with BasicBlock(in_channel=4, channel=4, stride=1)
    N, C, H, W = 2, 4, 16, 16

    key = jax.random.PRNGKey(0)
    kx, k1, k2, k3, k4, k5, k6 = jax.random.split(key, 7)

    x = jax.random.normal(kx, (N, C, H, W), jnp.float32)

    # Deterministic synthetic parameters (PyTorch (Cout,Cin,3,3) -> HWIO here).
    w1 = jax.random.normal(k1, (3, 3, C, C), jnp.float32) * 0.1
    w2 = jax.random.normal(k2, (3, 3, C, C), jnp.float32) * 0.1
    g1 = 1.0 + 0.1 * jax.random.normal(k3, (C,), jnp.float32)
    b1 = 0.1 * jax.random.normal(k4, (C,), jnp.float32)
    g2 = 1.0 + 0.1 * jax.random.normal(k5, (C,), jnp.float32)
    b2 = 0.1 * jax.random.normal(k6, (C,), jnp.float32)

    ref = reference_basic_block(x, w1, g1, b1, w2, g2, b2)

    # f32 compute path: tight check against the pure-JAX reference.
    out = jax.block_until_ready(basic_block(x, w1, g1, b1, w2, g2, b2))
    assert out.shape == (N, C, H, W)
    assert jnp.allclose(out, ref, atol=1e-4, rtol=1e-4), (
        f"f32 max abs diff {jnp.max(jnp.abs(out - ref))}")

    # bf16 MXU path (fast path on v6e/v7x): conv operands bf16, BN / VPU f32.
    out_bf16 = jax.block_until_ready(
        basic_block(x, w1, g1, b1, w2, g2, b2, compute_dtype=jnp.bfloat16))
    assert out_bf16.shape == (N, C, H, W)
    assert float(jnp.max(jnp.abs(out_bf16 - ref))) < 0.1

    print("KERNEL_OK")
</pallas_src>

<mosaic_0001>
module attributes {stable_mosaic.version = 11 : i64} {
  func.func @basic_block_kernel(%arg0: memref<16x128xf32, #tpu.memory_space<vmem>>, %arg1: memref<384x128xf32, #tpu.memory_space<vmem>>, %arg2: memref<384x128xf32, #tpu.memory_space<vmem>>, %arg3: memref<1x4xf32, #tpu.memory_space<vmem>>, %arg4: memref<1x4xf32, #tpu.memory_space<vmem>>, %arg5: memref<1x4xf32, #tpu.memory_space<vmem>>, %arg6: memref<1x4xf32, #tpu.memory_space<vmem>>, %arg7: memref<128x4xf32, #tpu.memory_space<vmem>>, %arg8: memref<4x128xf32, #tpu.memory_space<vmem>>, %arg9: memref<16x128xf32, #tpu.memory_space<vmem>>, %arg10: memref<16x384xf32, #tpu.memory_space<vmem>>) attributes {dimension_semantics = [], scalar_prefetch = 0 : i64, scratch_operands = 1 : i64, tpu.core_type = #tpu.core_type<tc>} {
    %c0 = arith.constant 0 : index
    %c0_0 = arith.constant 0 : index
    %0 = vector.load %arg7[%c0, %c0_0] : memref<128x4xf32, #tpu.memory_space<vmem>>, vector<128x4xf32>
    %c0_1 = arith.constant 0 : index
    %c0_2 = arith.constant 0 : index
    %1 = vector.load %arg8[%c0_1, %c0_2] : memref<4x128xf32, #tpu.memory_space<vmem>>, vector<4x128xf32>
    %cst = arith.constant 0.000000e+00 : f32
    %2 = vector.broadcast %cst : f32 to vector<1x128xf32>
    %c0_3 = arith.constant 0 : index
    %c0_4 = arith.constant 0 : index
    %3 = vector.load %arg10[%c0_3, %c0_4] : memref<16x384xf32, #tpu.memory_space<vmem>>, vector<1x128xf32>
    tpu.vector_store %arg10[%c0_3, %c0_4], %2 {strides = array<i32>} : memref<16x384xf32, #tpu.memory_space<vmem>>, vector<1x128xf32>,
    %c7 = arith.constant 7 : index
    %c256 = arith.constant 256 : index
    %4 = vector.load %arg10[%c7, %c256] : memref<16x384xf32, #tpu.memory_space<vmem>>, vector<1x128xf32>
    tpu.vector_store %arg10[%c7, %c256], %2 {strides = array<i32>} : memref<16x384xf32, #tpu.memory_space<vmem>>, vector<1x128xf32>,
    %c8 = arith.constant 8 : index
    %c0_5 = arith.constant 0 : index
    %5 = vector.load %arg10[%c8, %c0_5] : memref<16x384xf32, #tpu.memory_space<vmem>>, vector<1x128xf32>
    tpu.vector_store %arg10[%c8, %c0_5], %2 {strides = array<i32>} : memref<16x384xf32, #tpu.memory_space<vmem>>, vector<1x128xf32>,
    %c15 = arith.constant 15 : index
    %c256_6 = arith.constant 256 : index
    %6 = vector.load %arg10[%c15, %c256_6] : memref<16x384xf32, #tpu.memory_space<vmem>>, vector<1x128xf32>
    tpu.vector_store %arg10[%c15, %c256_6], %2 {strides = array<i32>} : memref<16x384xf32, #tpu.memory_space<vmem>>, vector<1x128xf32>,
    %c0_7 = arith.constant 0 : index
    %c0_8 = arith.constant 0 : index
    %7 = vector.load %arg0[%c0_7, %c0_8] : memref<16x128xf32, #tpu.memory_space<vmem>>, vector<16x128xf32>
    %c0_9 = arith.constant 0 : index
    %c128 = arith.constant 128 : index
    %8 = vector.load %arg10[%c0_9, %c128] : memref<16x384xf32, #tpu.memory_space<vmem>>, vector<16x128xf32>
    tpu.vector_store %arg10[%c0_9, %c128], %7 {strides = array<i32>} : memref<16x384xf32, #tpu.memory_space<vmem>>, vector<16x128xf32>,
    %9 = vector.extract_strided_slice %7 {offsets = [0, 0], sizes = [7, 128], strides = [1, 1]} : vector<16x128xf32> to vector<7x128xf32>
    %c1 = arith.constant 1 : index
    %c0_10 = arith.constant 0 : index
    %10 = vector.load %arg10[%c1, %c0_10] : memref<16x384xf32, #tpu.memory_space<vmem>>, vector<7x128xf32>
    tpu.vector_store %arg10[%c1, %c0_10], %9 {strides = array<i32>} : memref<16x384xf32, #tpu.memory_space<vmem>>, vector<7x128xf32>,
    %11 = vector.extract_strided_slice %7 {offsets = [1, 0], sizes = [7, 128], strides = [1, 1]} : vector<16x128xf32> to vector<7x128xf32>
    %c0_11 = arith.constant 0 : index
    %c256_12 = arith.constant 256 : index
    %12 = vector.load %arg10[%c0_11, %c256_12] : memref<16x384xf32, #tpu.memory_space<vmem>>, vector<7x128xf32>
    tpu.vector_store %arg10[%c0_11, %c256_12], %11 {strides = array<i32>} : memref<16x384xf32, #tpu.memory_space<vmem>>, vector<7x128xf32>,
    %13 = vector.extract_strided_slice %7 {offsets = [8, 0], sizes = [7, 128], strides = [1, 1]} : vector<16x128xf32> to vector<7x128xf32>
    %c9 = arith.constant 9 : index
    %c0_13 = arith.constant 0 : index
    %14 = vector.load %arg10[%c9, %c0_13] : memref<16x384xf32, #tpu.memory_space<vmem>>, vector<7x128xf32>
    tpu.vector_store %arg10[%c9, %c0_13], %13 {strides = array<i32>} : memref<16x384xf32, #tpu.memory_space<vmem>>, vector<7x128xf32>,
    %15 = vector.extract_strided_slice %7 {offsets = [9, 0], sizes = [7, 128], strides = [1, 1]} : vector<16x128xf32> to vector<7x128xf32>
    %c8_14 = arith.constant 8 : index
    %c256_15 = arith.constant 256 : index
    %16 = vector.load %arg10[%c8_14, %c256_15] : memref<16x384xf32, #tpu.memory_space<vmem>>, vector<7x128xf32>
    tpu.vector_store %arg10[%c8_14, %c256_15], %15 {strides = array<i32>} : memref<16x384xf32, #tpu.memory_space<vmem>>, vector<7x128xf32>,
    %c0_16 = arith.constant 0 : index
    %c0_17 = arith.constant 0 : index
    %17 = vector.load %arg10[%c0_16, %c0_17] : memref<16x384xf32, #tpu.memory_space<vmem>>, vector<16x384xf32>
    %c0_18 = arith.constant 0 : index
    %c0_19 = arith.constant 0 : index
    %18 = vector.load %arg1[%c0_18, %c0_19] : memref<384x128xf32, #tpu.memory_space<vmem>>, vector<384x128xf32>
    %cst_20 = arith.constant dense<0.000000e+00> : vector<16x128xf32>
    %19 = tpu.matmul %17, %18, %cst_20 {dimension_numbers = #tpu.dot_dimension_numbers<[1], [0], [0], [1], [0, 0, 1, 1], [], []>} : vector<16x384xf32>, vector<384x128xf32>, vector<16x128xf32> -> vector<16x128xf32>
    %cst_21 = arith.constant dense<0.000000e+00> : vector<128xf32>
    %20 = vector.multi_reduction <add>, %19, %cst_21 [0] : vector<16x128xf32> to vector<128xf32>
    %21 = vector.shape_cast %20 : vector<128xf32> to vector<1x128xf32>
    %22 = arith.mulf %19, %19 : vector<16x128xf32>
    %cst_22 = arith.constant dense<0.000000e+00> : vector<128xf32>
    %23 = vector.multi_reduction <add>, %22, %cst_22 [0] : vector<16x128xf32> to vector<128xf32>
    %24 = vector.shape_cast %23 : vector<128xf32> to vector<1x128xf32>
    %25 = tpu.concatenate %21, %24 in 0 : vector<1x128xf32>, vector<1x128xf32> -> vector<2x128xf32>
    %cst_23 = arith.constant dense<0.000000e+00> : vector<2x4xf32>
    %26 = tpu.matmul %25, %0, %cst_23 {dimension_numbers = #tpu.dot_dimension_numbers<[1], [0], [0], [1], [0, 0, 1, 1], [], []>} : vector<2x128xf32>, vector<128x4xf32>, vector<2x4xf32> -> vector<2x4xf32>
    %cst_24 = arith.constant 5.120000e+02 : f32
    %27 = vector.broadcast %cst_24 : f32 to vector<2x4xf32>
    %28 = arith.divf %26, %27 : vector<2x4xf32>
    %29 = vector.extract_strided_slice %28 {offsets = [0, 0], sizes = [1, 4], strides = [1, 1]} : vector<2x4xf32> to vector<1x4xf32>
    %30 = vector.extract_strided_slice %28 {offsets = [1, 0], sizes = [1, 4], strides = [1, 1]} : vector<2x4xf32> to vector<1x4xf32>
    %31 = arith.mulf %29, %29 : vector<1x4xf32>
    %32 = arith.subf %30, %31 : vector<1x4xf32>
    %c0_25 = arith.constant 0 : index
    %c0_26 = arith.constant 0 : index
    %33 = vector.load %arg3[%c0_25, %c0_26] : memref<1x4xf32, #tpu.memory_space<vmem>>, vector<1x4xf32>
    %cst_27 = arith.constant 9.99999974E-6 : f32
    %34 = vector.broadcast %cst_27 : f32 to vector<1x4xf32>
    %35 = arith.addf %32, %34 : vector<1x4xf32>
    %36 = math.rsqrt %35 : vector<1x4xf32>
    %37 = arith.mulf %33, %36 : vector<1x4xf32>
    %c0_28 = arith.constant 0 : index
    %c0_29 = arith.constant 0 : index
    %38 = vector.load %arg4[%c0_28, %c0_29] : memref<1x4xf32, #tpu.memory_space<vmem>>, vector<1x4xf32>
    %39 = arith.mulf %29, %37 : vector<1x4xf32>
    %40 = arith.subf %38, %39 : vector<1x4xf32>
    %41 = tpu.concatenate %37, %40 in 0 : vector<1x4xf32>, vector<1x4xf32> -> vector<2x4xf32>
    %cst_30 = arith.constant dense<0.000000e+00> : vector<2x128xf32>
    %42 = tpu.matmul %41, %1, %cst_30 {dimension_numbers = #tpu.dot_dimension_numbers<[1], [0], [0], [1], [0, 0, 1, 1], [], []>} : vector<2x4xf32>, vector<4x128xf32>, vector<2x128xf32> -> vector<2x128xf32>
    %43 = vector.extract_strided_slice %42 {offsets = [0, 0], sizes = [1, 128], strides = [1, 1]} : vector<2x128xf32> to vector<1x128xf32>
    %44 = vector.broadcast %43 : vector<1x128xf32> to vector<16x128xf32>
    %45 = arith.mulf %19, %44 : vector<16x128xf32>
    %46 = vector.extract_strided_slice %42 {offsets = [1, 0], sizes = [1, 128], strides = [1, 1]} : vector<2x128xf32> to vector<1x128xf32>
    %47 = vector.broadcast %46 : vector<1x128xf32> to vector<16x128xf32>
    %48 = arith.addf %45, %47 : vector<16x128xf32>
    %cst_31 = arith.constant 0.000000e+00 : f32
    %49 = vector.broadcast %cst_31 : f32 to vector<16x128xf32>
    %50 = arith.maximumf %48, %49 : vector<16x128xf32>
    %c0_32 = arith.constant 0 : index
    %c128_33 = arith.constant 128 : index
    %51 = vector.load %arg10[%c0_32, %c128_33] : memref<16x384xf32, #tpu.memory_space<vmem>>, vector<16x128xf32>
    tpu.vector_store %arg10[%c0_32, %c128_33], %50 {strides = array<i32>} : memref<16x384xf32, #tpu.memory_space<vmem>>, vector<16x128xf32>,
    %52 = vector.extract_strided_slice %50 {offsets = [0, 0], sizes = [7, 128], strides = [1, 1]} : vector<16x128xf32> to vector<7x128xf32>
    %c1_34 = arith.constant 1 : index
    %c0_35 = arith.constant 0 : index
    %53 = vector.load %arg10[%c1_34, %c0_35] : memref<16x384xf32, #tpu.memory_space<vmem>>, vector<7x128xf32>
    tpu.vector_store %arg10[%c1_34, %c0_35], %52 {strides = array<i32>} : memref<16x384xf32, #tpu.memory_space<vmem>>, vector<7x128xf32>,
    %54 = vector.extract_strided_slice %50 {offsets = [1, 0], sizes = [7, 128], strides = [1, 1]} : vector<16x128xf32> to vector<7x128xf32>
    %c0_36 = arith.constant 0 : index
    %c256_37 = arith.constant 256 : index
    %55 = vector.load %arg10[%c0_36, %c256_37] : memref<16x384xf32, #tpu.memory_space<vmem>>, vector<7x128xf32>
    tpu.vector_store %arg10[%c0_36, %c256_37], %54 {strides = array<i32>} : memref<16x384xf32, #tpu.memory_space<vmem>>, vector<7x128xf32>,
    %56 = vector.extract_strided_slice %50 {offsets = [8, 0], sizes = [7, 128], strides = [1, 1]} : vector<16x128xf32> to vector<7x128xf32>
    %c9_38 = arith.constant 9 : index
    %c0_39 = arith.constant 0 : index
    %57 = vector.load %arg10[%c9_38, %c0_39] : memref<16x384xf32, #tpu.memory_space<vmem>>, vector<7x128xf32>
    tpu.vector_store %arg10[%c9_38, %c0_39], %56 {strides = array<i32>} : memref<16x384xf32, #tpu.memory_space<vmem>>, vector<7x128xf32>,
    %58 = vector.extract_strided_slice %50 {offsets = [9, 0], sizes = [7, 128], strides = [1, 1]} : vector<16x128xf32> to vector<7x128xf32>
    %c8_40 = arith.constant 8 : index
    %c256_41 = arith.constant 256 : index
    %59 = vector.load %arg10[%c8_40, %c256_41] : memref<16x384xf32, #tpu.memory_space<vmem>>, vector<7x128xf32>
    tpu.vector_store %arg10[%c8_40, %c256_41], %58 {strides = array<i32>} : memref<16x384xf32, #tpu.memory_space<vmem>>, vector<7x128xf32>,
    %c0_42 = arith.constant 0 : index
    %c0_43 = arith.constant 0 : index
    %60 = vector.load %arg10[%c0_42, %c0_43] : memref<16x384xf32, #tpu.memory_space<vmem>>, vector<16x384xf32>
    %c0_44 = arith.constant 0 : index
    %c0_45 = arith.constant 0 : index
    %61 = vector.load %arg2[%c0_44, %c0_45] : memref<384x128xf32, #tpu.memory_space<vmem>>, vector<384x128xf32>
    %cst_46 = arith.constant dense<0.000000e+00> : vector<16x128xf32>
    %62 = tpu.matmul %60, %61, %cst_46 {dimension_numbers = #tpu.dot_dimension_numbers<[1], [0], [0], [1], [0, 0, 1, 1], [], []>} : vector<16x384xf32>, vector<384x128xf32>, vector<16x128xf32> -> vector<16x128xf32>
    %cst_47 = arith.constant dense<0.000000e+00> : vector<128xf32>
    %63 = vector.multi_reduction <add>, %62, %cst_47 [0] : vector<16x128xf32> to vector<128xf32>
    %64 = vector.shape_cast %63 : vector<128xf32> to vector<1x128xf32>
    %65 = arith.mulf %62, %62 : vector<16x128xf32>
    %cst_48 = arith.constant dense<0.000000e+00> : vector<128xf32>
    %66 = vector.multi_reduction <add>, %65, %cst_48 [0] : vector<16x128xf32> to vector<128xf32>
    %67 = vector.shape_cast %66 : vector<128xf32> to vector<1x128xf32>
    %68 = tpu.concatenate %64, %67 in 0 : vector<1x128xf32>, vector<1x128xf32> -> vector<2x128xf32>
    %cst_49 = arith.constant dense<0.000000e+00> : vector<2x4xf32>
    %69 = tpu.matmul %68, %0, %cst_49 {dimension_numbers = #tpu.dot_dimension_numbers<[1], [0], [0], [1], [0, 0, 1, 1], [], []>} : vector<2x128xf32>, vector<128x4xf32>, vector<2x4xf32> -> vector<2x4xf32>
    %cst_50 = arith.constant 5.120000e+02 : f32
    %70 = vector.broadcast %cst_50 : f32 to vector<2x4xf32>
    %71 = arith.divf %69, %70 : vector<2x4xf32>
    %72 = vector.extract_strided_slice %71 {offsets = [0, 0], sizes = [1, 4], strides = [1, 1]} : vector<2x4xf32> to vector<1x4xf32>
    %73 = vector.extract_strided_slice %71 {offsets = [1, 0], sizes = [1, 4], strides = [1, 1]} : vector<2x4xf32> to vector<1x4xf32>
    %74 = arith.mulf %72, %72 : vector<1x4xf32>
    %75 = arith.subf %73, %74 : vector<1x4xf32>
    %c0_51 = arith.constant 0 : index
    %c0_52 = arith.constant 0 : index
    %76 = vector.load %arg5[%c0_51, %c0_52] : memref<1x4xf32, #tpu.memory_space<vmem>>, vector<1x4xf32>
    %cst_53 = arith.constant 9.99999974E-6 : f32
    %77 = vector.broadcast %cst_53 : f32 to vector<1x4xf32>
    %78 = arith.addf %75, %77 : vector<1x4xf32>
    %79 = math.rsqrt %78 : vector<1x4xf32>
    %80 = arith.mulf %76, %79 : vector<1x4xf32>
    %c0_54 = arith.constant 0 : index
    %c0_55 = arith.constant 0 : index
    %81 = vector.load %arg6[%c0_54, %c0_55] : memref<1x4xf32, #tpu.memory_space<vmem>>, vector<1x4xf32>
    %82 = arith.mulf %72, %80 : vector<1x4xf32>
    %83 = arith.subf %81, %82 : vector<1x4xf32>
    %84 = tpu.concatenate %80, %83 in 0 : vector<1x4xf32>, vector<1x4xf32> -> vector<2x4xf32>
    %cst_56 = arith.constant dense<0.000000e+00> : vector<2x128xf32>
    %85 = tpu.matmul %84, %1, %cst_56 {dimension_numbers = #tpu.dot_dimension_numbers<[1], [0], [0], [1], [0, 0, 1, 1], [], []>} : vector<2x4xf32>, vector<4x128xf32>, vector<2x128xf32> -> vector<2x128xf32>
    %86 = vector.extract_strided_slice %85 {offsets = [0, 0], sizes = [1, 128], strides = [1, 1]} : vector<2x128xf32> to vector<1x128xf32>
    %87 = vector.broadcast %86 : vector<1x128xf32> to vector<16x128xf32>
    %88 = arith.mulf %62, %87 : vector<16x128xf32>
    %89 = vector.extract_strided_slice %85 {offsets = [1, 0], sizes = [1, 128], strides = [1, 1]} : vector<2x128xf32> to vector<1x128xf32>
    %90 = vector.broadcast %89 : vector<1x128xf32> to vector<16x128xf32>
    %91 = arith.addf %88, %90 : vector<16x128xf32>
    %92 = arith.addf %91, %7 : vector<16x128xf32>
    %cst_57 = arith.constant 0.000000e+00 : f32
    %93 = vector.broadcast %cst_57 : f32 to vector<16x128xf32>
    %94 = arith.maximumf %92, %93 : vector<16x128xf32>
    %c0_58 = arith.constant 0 : index
    %c0_59 = arith.constant 0 : index
    %95 = vector.load %arg9[%c0_58, %c0_59] : memref<16x128xf32, #tpu.memory_space<vmem>>, vector<16x128xf32>
    tpu.vector_store %arg9[%c0_58, %c0_59], %94 {strides = array<i32>} : memref<16x128xf32, #tpu.memory_space<vmem>>, vector<16x128xf32>,
    return
  }
}

</mosaic_0001>

<llo_original>
// kernel: tpu_custom_call.1
$region0: #{tpu_custom_call.1}
  #allocation0 [shape = 'u32[]', space=smem, size = 0x4, offset = 0x4, fixed_abs, tag = 'smem constant byte address 0x4 - core index']
  #allocation1 [shape = 'u32[144,128]{1,0:T(1,128)}', space=vmem, size = 0x12000, scoped, tag = 'internal scratch']
  #allocation2 [shape = 'f32[16,384]{1,0:T(8,128)}', space=vmem, size = 0x6000, scoped, tag = 'scratch operand']
  %s0 = inlined_call_operand.vmem [shape: f32[16,128], index: 0, kind: input, shape index: {}]
  %s1 = inlined_call_operand.hbm [shape: f32[384,128], index: 1, kind: input, shape index: {}]
  %s2 = inlined_call_operand.hbm [shape: f32[384,128], index: 2, kind: input, shape index: {}]
  %s3 = inlined_call_operand.vmem [shape: f32[1,4], index: 3, kind: input, shape index: {}]
  %s4 = inlined_call_operand.vmem [shape: f32[1,4], index: 4, kind: input, shape index: {}]
  %s5 = inlined_call_operand.vmem [shape: f32[1,4], index: 5, kind: input, shape index: {}]
  %s6 = inlined_call_operand.vmem [shape: f32[1,4], index: 6, kind: input, shape index: {}]
  %s7 = inlined_call_operand.vmem [shape: f32[128,4], index: 7, kind: input, shape index: {}]
  %s8 = inlined_call_operand.vmem [shape: f32[4,128], index: 8, kind: input, shape index: {}]
  %s9 = inlined_call_operand.hbm [shape: f32[16,128], index: 9, kind: output, shape index: {}]
  %s10 = sld [smem:[#allocation0]]
  $region54: #{tpu_custom_call.1} parent=0
    _
  %s12 = ssub.s32 1, %s10
  %s13 = scalar_select 0, %s12, %s10
  $region1: #{tpu_custom_call.1} parent=0
    #allocation3 [shape = 'u8[196608]{0}', space=vmem, size = 0x30000, scoped, tag = 'input window, operand 1, single buffered']
    #allocation4 [shape = 's32[1]{0}', space=sflag, size = 0x4, scoped, tag = 'scoped memory for tpu_custom_call.1']
    #allocation5 [shape = 's32[1]{0}', space=sflag, size = 0x4, scoped, tag = 'scoped memory for tpu_custom_call.1']
    #allocation6 [shape = 'u8[196608]{0}', space=vmem, size = 0x30000, scoped, tag = 'input window, operand 2, single buffered']
    #allocation7 [shape = 's32[1]{0}', space=sflag, size = 0x4, scoped, tag = 'scoped memory for tpu_custom_call.1']
    #allocation8 [shape = 'u8[8192]{0}', space=vmem, size = 0x2000, scoped, tag = 'output window, operand 0, single buffered']
    %14 = vsyncpa [#allocation4], 0
    %15 = vsyncpa [#allocation7], 0
    %16 = vsyncpa [#allocation5], 0
    // Predicated region
    $region2: #{tpu_custom_call.1} parent=1 // pred_check
      _
    $region3: #{tpu_custom_call.1} parent=1 // pred_check_branch
      %18 = sbr.rel (0) target = $region5
    $region4: #{tpu_custom_call.1} parent=1 // pred_region
      _
    $region5: #{tpu_custom_call.1} parent=1 // pred_fallthru
      _
    // Predicated region
    $region6: #{tpu_custom_call.1} parent=1 // pred_check
      _
    $region7: #{tpu_custom_call.1} parent=1 // pred_check_branch
      %20 = sbr.rel (0) target = $region9
    $region8: #{tpu_custom_call.1} parent=1 // pred_region
      %s22 = ssub.s32 6144, 6144
      %23 = vsyncadd [#allocation4], %s22
      %s24 = sshll.u32 [#allocation3], 4
      %s25 = int_to_ptr.vmem [resolvable:$true] %s24
      %30 = dma.hbm_to_vmem [thread:$0]  %s1, 6144, %s25, [#allocation4], 128, 128, 8
    $region9: #{tpu_custom_call.1} parent=1 // pred_fallthru
      _
    // Predicated region
    $region10: #{tpu_custom_call.1} parent=1 // pred_check
      _
    $region11: #{tpu_custom_call.1} parent=1 // pred_check_branch
      %32 = sbr.rel (0) target = $region13
    $region12: #{tpu_custom_call.1} parent=1 // pred_region
      %s34 = ssub.s32 6144, 6144
      %35 = vsyncadd [#allocation7], %s34
      %s36 = sshll.u32 [#allocation6], 4
      %s37 = int_to_ptr.vmem [resolvable:$true] %s36
      %42 = dma.hbm_to_vmem [thread:$0]  %s2, 6144, %s37, [#allocation7], 128, 128, 8
    $region13: #{tpu_custom_call.1} parent=1 // pred_fallthru
      _
    // Predicated region
    $region14: #{tpu_custom_call.1} parent=1 // pred_check
      _
    $region15: #{tpu_custom_call.1} parent=1 // pred_check_branch
      %44 = sbr.rel (0) target = $region17
    $region16: #{tpu_custom_call.1} parent=1 // pred_region
      _
    $region17: #{tpu_custom_call.1} parent=1 // pred_fallthru
      _
    // Predicated region
    $region18: #{tpu_custom_call.1} parent=1 // pred_check
      _
    $region19: #{tpu_custom_call.1} parent=1 // pred_check_branch
      %46 = sbr.rel (0) target = $region21
    $region20: #{tpu_custom_call.1} parent=1 // pred_region
      _
    $region21: #{tpu_custom_call.1} parent=1 // pred_fallthru
      _
    // Predicated region
    $region22: #{tpu_custom_call.1} parent=1 // pred_check
      _
    $region23: #{tpu_custom_call.1} parent=1 // pred_check_branch
      %48 = sbr.rel (0) target = $region25
    $region24: #{tpu_custom_call.1} parent=1 // pred_region
      _
    $region25: #{tpu_custom_call.1} parent=1 // pred_fallthru
      _
    // Predicated region
    $region26: #{tpu_custom_call.1} parent=1 // pred_check
      _
    $region27: #{tpu_custom_call.1} parent=1 // pred_check_branch
      %50 = sbr.rel (0) target = $region29
    $region28: #{tpu_custom_call.1} parent=1 // pred_region
      _
    $region29: #{tpu_custom_call.1} parent=1 // pred_fallthru
      _
    // Predicated region
    $region30: #{tpu_custom_call.1} parent=1 // pred_check
      _
    $region31: #{tpu_custom_call.1} parent=1 // pred_check_branch
      %52 = sbr.rel (0) target = $region33
    $region32: #{tpu_custom_call.1} parent=1 // pred_region
      _
    $region33: #{tpu_custom_call.1} parent=1 // pred_fallthru
      _
    // Predicated region
    $region34: #{tpu_custom_call.1} parent=1 // pred_check
      _
    $region35: #{tpu_custom_call.1} parent=1 // pred_check_branch
      %54 = sbr.rel (0) target = $region37
    $region36: #{tpu_custom_call.1} parent=1 // pred_region
      _
    $region37: #{tpu_custom_call.1} parent=1 // pred_fallthru
      _
    // Predicated region
    $region38: #{tpu_custom_call.1} parent=1 // pred_check
      _
    $region39: #{tpu_custom_call.1} parent=1 // pred_check_branch
      %56 = sbr.rel (0) target = $region41
    $region40: #{tpu_custom_call.1} parent=1 // pred_region
      %57 = dma.done [#allocation4], 6144
    $region41: #{tpu_custom_call.1} parent=1 // pred_fallthru
      _
    // Predicated region
    $region42: #{tpu_custom_call.1} parent=1 // pred_check
      _
    $region43: #{tpu_custom_call.1} parent=1 // pred_check_branch
      %59 = sbr.rel (0) target = $region45
    $region44: #{tpu_custom_call.1} parent=1 // pred_region
      %60 = dma.done [#allocation7], 6144
    $region45: #{tpu_custom_call.1} parent=1 // pred_fallthru
      _
    %v61 = vld [vmem:[%s7] sm:$0xff]
    %v62 = vld [vmem:[%s7 + $0x8] sm:$0xff]
    %v63 = vld [vmem:[%s7 + $0x10] sm:$0xff]
    %v64 = vld [vmem:[%s7 + $0x18] sm:$0xff]
    %v65 = vld [vmem:[%s7 + $0x20] sm:$0xff]
    %v66 = vld [vmem:[%s7 + $0x28] sm:$0xff]
    %v67 = vld [vmem:[%s7 + $0x30] sm:$0xff]
    %v68 = vld [vmem:[%s7 + $0x38] sm:$0xff]
    %v69 = vld [vmem:[%s7 + $0x40] sm:$0xff]
    %v70 = vld [vmem:[%s7 + $0x48] sm:$0xff]
    %v71 = vld [vmem:[%s7 + $0x50] sm:$0xff]
    %v72 = vld [vmem:[%s7 + $0x58] sm:$0xff]
    %v73 = vld [vmem:[%s7 + $0x60] sm:$0xff]
    %v74 = vld [vmem:[%s7 + $0x68] sm:$0xff]
    %v75 = vld [vmem:[%s7 + $0x70] sm:$0xff]
    %v76 = vld [vmem:[%s7 + $0x78] sm:$0xff]
    %v77 = vld [vmem:[%s8] sm:$0xf]
    %78 = vst [vmem:[#allocation2] sm:$0x1] 0.0
    %79 = vst [vmem:[#allocation2 + $0x17] sm:$0x1] 0.0
    %80 = vst [vmem:[#allocation2 + $0x18] sm:$0x1] 0.0
    %81 = vst [vmem:[#allocation2 + $0x2f] sm:$0x1] 0.0
    %v82 = vld [vmem:[%s0] sm:$0xff]
    %v83 = vld [vmem:[%s0 + $0x8] sm:$0xff]
    %84 = vst [vmem:[#allocation2 + $0x8] sm:$0xff] %v82
    %85 = vst [vmem:[#allocation2 + $0x20] sm:$0xff] %v83
    %v87 = vrot.slane %v82, 7
    %89 = vst [vmem:[#allocation2] sm:$0xfe] %v87
    %v90 = vrot.slane %v82, 1
    %92 = vst [vmem:[#allocation2 + $0x10] sm:$0x7f] %v90
    %v94 = vrot.slane %v83, 7
    %96 = vst [vmem:[#allocation2 + $0x18] sm:$0xfe] %v94
    %v97 = vrot.slane %v83, 1
    %99 = vst [vmem:[#allocation2 + $0x28] sm:$0x7f] %v97
    %v100 = vld [vmem:[#allocation2] sm:$0xff]
    %v101 = vld [vmem:[#allocation2 + $0x8] sm:$0xff]
    %v102 = vld [vmem:[#allocation2 + $0x10] sm:$0xff]
    %v103 = vld [vmem:[#allocation2 + $0x18] sm:$0xff]
    %v104 = vld [vmem:[#allocation2 + $0x20] sm:$0xff]
    %v105 = vld [vmem:[#allocation2 + $0x28] sm:$0xff]
    %v106 = vld [vmem:[#allocation3] sm:$0xff]
    %v107 = vld [vmem:[#allocation3 + $0x8] sm:$0xff]
    %v108 = vld [vmem:[#allocation3 + $0x10] sm:$0xff]
    %v109 = vld [vmem:[#allocation3 + $0x18] sm:$0xff]
    %v110 = vld [vmem:[#allocation3 + $0x20] sm:$0xff]
    %v111 = vld [vmem:[#allocation3 + $0x28] sm:$0xff]
    %v112 = vld [vmem:[#allocation3 + $0x30] sm:$0xff]
    %v113 = vld [vmem:[#allocation3 + $0x38] sm:$0xff]
    %v114 = vld [vmem:[#allocation3 + $0x40] sm:$0xff]
    %v115 = vld [vmem:[#allocation3 + $0x48] sm:$0xff]
    %v116 = vld [vmem:[#allocation3 + $0x50] sm:$0xff]
    %v117 = vld [vmem:[#allocation3 + $0x58] sm:$0xff]
    %v118 = vld [vmem:[#allocation3 + $0x60] sm:$0xff]
    %v119 = vld [vmem:[#allocation3 + $0x68] sm:$0xff]
    %v120 = vld [vmem:[#allocation3 + $0x70] sm:$0xff]
    %v121 = vld [vmem:[#allocation3 + $0x78] sm:$0xff]
    %v122 = vld [vmem:[#allocation3 + $0x80] sm:$0xff]
    %v123 = vld [vmem:[#allocation3 + $0x88] sm:$0xff]
    %v124 = vld [vmem:[#allocation3 + $0x90] sm:$0xff]
    %v125 = vld [vmem:[#allocation3 + $0x98] sm:$0xff]
    %v126 = vld [vmem:[#allocation3 + $0xa0] sm:$0xff]
    %v127 = vld [vmem:[#allocation3 + $0xa8] sm:$0xff]
    %v128 = vld [vmem:[#allocation3 + $0xb0] sm:$0xff]
    %v129 = vld [vmem:[#allocation3 + $0xb8] sm:$0xff]
    %v130 = vld [vmem:[#allocation3 + $0xc0] sm:$0xff]
    %v131 = vld [vmem:[#allocation3 + $0xc8] sm:$0xff]
    %v132 = vld [vmem:[#allocation3 + $0xd0] sm:$0xff]
    %v133 = vld [vmem:[#allocation3 + $0xd8] sm:$0xff]
    %v134 = vld [vmem:[#allocation3 + $0xe0] sm:$0xff]
    %v135 = vld [vmem:[#allocation3 + $0xe8] sm:$0xff]
    %v136 = vld [vmem:[#allocation3 + $0xf0] sm:$0xff]
    %v137 = vld [vmem:[#allocation3 + $0xf8] sm:$0xff]
    %v138 = vld [vmem:[#allocation3 + $0x100] sm:$0xff]
    %v139 = vld [vmem:[#allocation3 + $0x108] sm:$0xff]
    %v140 = vld [vmem:[#allocation3 + $0x110] sm:$0xff]
    %v141 = vld [vmem:[#allocation3 + $0x118] sm:$0xff]
    %v142 = vld [vmem:[#allocation3 + $0x120] sm:$0xff]
    %v143 = vld [vmem:[#allocation3 + $0x128] sm:$0xff]
    %v144 = vld [vmem:[#allocation3 + $0x130] sm:$0xff]
    %v145 = vld [vmem:[#allocation3 + $0x138] sm:$0xff]
    %v146 = vld [vmem:[#allocation3 + $0x140] sm:$0xff]
    %v147 = vld [vmem:[#allocation3 + $0x148] sm:$0xff]
    %v148 = vld [vmem:[#allocation3 + $0x150] sm:$0xff]
    %v149 = vld [vmem:[#allocation3 + $0x158] sm:$0xff]
    %v150 = vld [vmem:[#allocation3 + $0x160] sm:$0xff]
    %v151 = vld [vmem:[#allocation3 + $0x168] sm:$0xff]
    %v152 = vld [vmem:[#allocation3 + $0x170] sm:$0xff]
    %v153 = vld [vmem:[#allocation3 + $0x178] sm:$0xff]
    %154 = vmatprep.subr.mxu0 0.0
    %155 = vmatpush1.msra.mxu0 %v106
    %156 = vmatprep.subr.mxu0 0.0
    %157 = vmatpush1.msra.mxu0 %v107
    %158 = vmatprep.subr.mxu0 0.0
    %159 = vmatpush1.msra.mxu0 %v108
    %160 = vmatprep.subr.mxu0 0.0
    %161 = vmatpush1.msra.mxu0 %v109
    %162 = vmatprep.subr.mxu0 0.0
    %163 = vmatpush1.msra.mxu0 %v110
    %164 = vmatprep.subr.mxu0 0.0
    %165 = vmatpush1.msra.mxu0 %v111
    %166 = vmatprep.subr.mxu0 0.0
    %167 = vmatpush1.msra.mxu0 %v112
    %168 = vmatprep.subr.mxu0 0.0
    %169 = vmatpush1.msra.mxu0 %v113
    %170 = vmatprep.subr.mxu0 0.0
    %171 = vmatpush1.msra.mxu0 %v114
    %172 = vmatprep.subr.mxu0 0.0
    %173 = vmatpush1.msra.mxu0 %v115
    %174 = vmatprep.subr.mxu0 0.0
    %175 = vmatpush1.msra.mxu0 %v116
    %176 = vmatprep.subr.mxu0 0.0
    %177 = vmatpush1.msra.mxu0 %v117
    %178 = vmatprep.subr.mxu0 0.0
    %179 = vmatpush1.msra.mxu0 %v118
    %180 = vmatprep.subr.mxu0 0.0
    %181 = vmatpush1.msra.mxu0 %v119
    %182 = vmatprep.subr.mxu0 0.0
    %183 = vmatpush1.msra.mxu0 %v120
    %184 = vmatprep.subr.mxu0 0.0
    %185 = vmatpush1.msra.mxu0 %v121
    %186 = vmatprep.subr.mxu0 0.0
    %187 = vmatpush1.msra.mxu0 %v122
    %188 = vmatprep.subr.mxu0 0.0
    %189 = vmatpush1.msra.mxu0 %v123
    %190 = vmatprep.subr.mxu0 0.0
    %191 = vmatpush1.msra.mxu0 %v124
    %192 = vmatprep.subr.mxu0 0.0
    %193 = vmatpush1.msra.mxu0 %v125
    %194 = vmatprep.subr.mxu0 0.0
    %195 = vmatpush1.msra.mxu0 %v126
    %196 = vmatprep.subr.mxu0 0.0
    %197 = vmatpush1.msra.mxu0 %v127
    %198 = vmatprep.subr.mxu0 0.0
    %199 = vmatpush1.msra.mxu0 %v128
    %200 = vmatprep.subr.mxu0 0.0
    %201 = vmatpush1.msra.mxu0 %v129
    %202 = vmatprep.subr.mxu0 0.0
    %203 = vmatpush1.msra.mxu0 %v130
    %204 = vmatprep.subr.mxu0 0.0
    %205 = vmatpush1.msra.mxu0 %v131
    %206 = vmatprep.subr.mxu0 0.0
    %207 = vmatpush1.msra.mxu0 %v132
    %208 = vmatprep.subr.mxu0 0.0
    %209 = vmatpush1.msra.mxu0 %v133
    %210 = vmatprep.subr.mxu0 0.0
    %211 = vmatpush1.msra.mxu0 %v134
    %212 = vmatprep.subr.mxu0 0.0
    %213 = vmatpush1.msra.mxu0 %v135
    %214 = vmatprep.subr.mxu0 0.0
    %215 = vmatpush1.msra.mxu0 %v136
    %216 = vmatprep.subr.mxu0 0.0
    %217 = vmatpush1.msra.mxu0 %v137
    %218 = vmatprep.mubr.f32.mxu0 %v101
    %219 = vmatmul.mubr.f32.gmra.mrb[0].mxu0 %v100
    %v220 = vpop.f32.mrb[0].mxu0
    %v221 = vadd.f32 0.0, %v220
    %v222 = vpop.f32.mrb[0].mxu0
    %223 = vmatprep.mubr.f32.mxu0 %v104
    %224 = vmatmul.mubr.f32.gmra.mrb[0].mxu0 %v103
    %v225 = vpop.f32.mrb[0].mxu0
    %v226 = vadd.f32 0.0, %v225
    %v227 = vpop.f32.mrb[0].mxu0
    %228 = vdwg.mxu0
    %229 = vmatprep.subr.mxu0 0.0
    %230 = vmatpush1.msra.mxu0 %v138
    %231 = vmatprep.subr.mxu0 0.0
    %232 = vmatpush1.msra.mxu0 %v139
    %233 = vmatprep.subr.mxu0 0.0
    %234 = vmatpush1.msra.mxu0 %v140
    %235 = vmatprep.subr.mxu0 0.0
    %236 = vmatpush1.msra.mxu0 %v141
    %237 = vmatprep.subr.mxu0 0.0
    %238 = vmatpush1.msra.mxu0 %v142
    %239 = vmatprep.subr.mxu0 0.0
    %240 = vmatpush1.msra.mxu0 %v143
    %241 = vmatprep.subr.mxu0 0.0
    %242 = vmatpush1.msra.mxu0 %v144
    %243 = vmatprep.subr.mxu0 0.0
    %244 = vmatpush1.msra.mxu0 %v145
    %245 = vmatprep.subr.mxu0 0.0
    %246 = vmatpush1.msra.mxu0 %v146
    %247 = vmatprep.subr.mxu0 0.0
    %248 = vmatpush1.msra.mxu0 %v147
    %249 = vmatprep.subr.mxu0 0.0
    %250 = vmatpush1.msra.mxu0 %v148
    %251 = vmatprep.subr.mxu0 0.0
    %252 = vmatpush1.msra.mxu0 %v149
    %253 = vmatprep.subr.mxu0 0.0
    %254 = vmatpush1.msra.mxu0 %v150
    %255 = vmatprep.subr.mxu0 0.0
    %256 = vmatpush1.msra.mxu0 %v151
    %257 = vmatprep.subr.mxu0 0.0
    %258 = vmatpush1.msra.mxu0 %v152
    %259 = vmatprep.subr.mxu0 0.0
    %260 = vmatpush1.msra.mxu0 %v153
    %261 = vmatprep.subr.mxu0 0.0
    %262 = vmatpush1.msra.mxu0 0.0
    %263 = vmatprep.subr.mxu0 0.0
    %264 = vmatpush1.msra.mxu0 0.0
    %265 = vmatprep.subr.mxu0 0.0
    %266 = vmatpush1.msra.mxu0 0.0
    %267 = vmatprep.subr.mxu0 0.0
    %268 = vmatpush1.msra.mxu0 0.0
    %269 = vmatprep.subr.mxu0 0.0
    %270 = vmatpush1.msra.mxu0 0.0
    %271 = vmatprep.subr.mxu0 0.0
    %272 = vmatpush1.msra.mxu0 0.0
    %273 = vmatprep.subr.mxu0 0.0
    %274 = vmatpush1.msra.mxu0 0.0
    %275 = vmatprep.subr.mxu0 0.0
    %276 = vmatpush1.msra.mxu0 0.0
    %277 = vmatprep.subr.mxu0 0.0
    %278 = vmatpush1.msra.mxu0 0.0
    %279 = vmatprep.subr.mxu0 0.0
    %280 = vmatpush1.msra.mxu0 0.0
    %281 = vmatprep.subr.mxu0 0.0
    %282 = vmatpush1.msra.mxu0 0.0
    %283 = vmatprep.subr.mxu0 0.0
    %284 = vmatpush1.msra.mxu0 0.0
    %285 = vmatprep.subr.mxu0 0.0
    %286 = vmatpush1.msra.mxu0 0.0
    %287 = vmatprep.subr.mxu0 0.0
    %288 = vmatpush1.msra.mxu0 0.0
    %289 = vmatprep.subr.mxu0 0.0
    %290 = vmatpush1.msra.mxu0 0.0
    %291 = vmatprep.subr.mxu0 0.0
    %292 = vmatpush1.msra.mxu0 0.0
    %293 = vmatprep.mubr.f32.mxu0 0.0
    %294 = vmatmul.mubr.f32.gmra.mrb[0].mxu0 %v102
    %v295 = vpop.f32.mrb[0].mxu0
    %v296 = vadd.f32 %v221, %v295
    %v297 = vpop.f32.mrb[0].mxu0
    %298 = vmatprep.mubr.f32.mxu0 0.0
    %299 = vmatmul.mubr.f32.gmra.mrb[0].mxu0 %v105
    %v300 = vpop.f32.mrb[0].mxu0
    %v301 = vadd.f32 %v226, %v300
    %v302 = vpop.f32.mrb[0].mxu0
    %303 = vdwg.mxu0
    %v304 = vadd.f32 %v296, %v301
    %v305 = vrot.slane %v304, 4
    %v306 = vadd.f32 %v304, %v305
    %v307 = vrot.slane %v306, 2
    %v308 = vadd.f32 %v306, %v307
    %v309 = vrot.slane %v308, 1
    %v310 = vadd.f32 %v308, %v309
    %v311 = vmul.f32 %v296, %v296
    %v312 = vmul.f32 %v301, %v301
    %v313 = vadd.f32 %v311, %v312
    %v314 = vrot.slane %v313, 4
    %v315 = vadd.f32 %v313, %v314
    %v316 = vrot.slane %v315, 2
    %v317 = vadd.f32 %v315, %v316
    %v318 = vrot.slane %v317, 1
    %v319 = vadd.f32 %v317, %v318
    %vm320 = vcmask 1040384
    %v321 = vsel %vm320, %v310, %v319
    %322 = vmatprep.subr.mxu0 0.0
    %323 = vmatpush1.msra.mxu0 %v61
    %324 = vmatprep.subr.mxu0 0.0
    %325 = vmatpush1.msra.mxu0 %v62
    %326 = vmatprep.subr.mxu0 0.0
    %327 = vmatpush1.msra.mxu0 %v63
    %328 = vmatprep.subr.mxu0 0.0
    %329 = vmatpush1.msra.mxu0 %v64
    %330 = vmatprep.subr.mxu0 0.0
    %331 = vmatpush1.msra.mxu0 %v65
    %332 = vmatprep.subr.mxu0 0.0
    %333 = vmatpush1.msra.mxu0 %v66
    %334 = vmatprep.subr.mxu0 0.0
    %335 = vmatpush1.msra.mxu0 %v67
    %336 = vmatprep.subr.mxu0 0.0
    %337 = vmatpush1.msra.mxu0 %v68
    %338 = vmatprep.subr.mxu0 0.0
    %339 = vmatpush1.msra.mxu0 %v69
    %340 = vmatprep.subr.mxu0 0.0
    %341 = vmatpush1.msra.mxu0 %v70
    %342 = vmatprep.subr.mxu0 0.0
    %343 = vmatpush1.msra.mxu0 %v71
    %344 = vmatprep.subr.mxu0 0.0
    %345 = vmatpush1.msra.mxu0 %v72
    %346 = vmatprep.subr.mxu0 0.0
    %347 = vmatpush1.msra.mxu0 %v73
    %348 = vmatprep.subr.mxu0 0.0
    %349 = vmatpush1.msra.mxu0 %v74
    %350 = vmatprep.subr.mxu0 0.0
    %351 = vmatpush1.msra.mxu0 %v75
    %352 = vmatprep.subr.mxu0 0.0
    %353 = vmatpush1.msra.mxu0 %v76
    %354 = vmatprep.subr.mxu0 0.0
    %355 = vmatpush1.msra.mxu0 0.0
    %356 = vmatprep.subr.mxu0 0.0
    %357 = vmatpush1.msra.mxu0 0.0
    %358 = vmatprep.subr.mxu0 0.0
    %359 = vmatpush1.msra.mxu0 0.0
    %360 = vmatprep.subr.mxu0 0.0
    %361 = vmatpush1.msra.mxu0 0.0
    %362 = vmatprep.subr.mxu0 0.0
    %363 = vmatpush1.msra.mxu0 0.0
    %364 = vmatprep.subr.mxu0 0.0
    %365 = vmatpush1.msra.mxu0 0.0
    %366 = vmatprep.subr.mxu0 0.0
    %367 = vmatpush1.msra.mxu0 0.0
    %368 = vmatprep.subr.mxu0 0.0
    %369 = vmatpush1.msra.mxu0 0.0
    %370 = vmatprep.subr.mxu0 0.0
    %371 = vmatpush1.msra.mxu0 0.0
    %372 = vmatprep.subr.mxu0 0.0
    %373 = vmatpush1.msra.mxu0 0.0
    %374 = vmatprep.subr.mxu0 0.0
    %375 = vmatpush1.msra.mxu0 0.0
    %376 = vmatprep.subr.mxu0 0.0
    %377 = vmatpush1.msra.mxu0 0.0
    %378 = vmatprep.subr.mxu0 0.0
    %379 = vmatpush1.msra.mxu0 0.0
    %380 = vmatprep.subr.mxu0 0.0
    %381 = vmatpush1.msra.mxu0 0.0
    %382 = vmatprep.subr.mxu0 0.0
    %383 = vmatpush1.msra.mxu0 0.0
    %384 = vmatprep.subr.mxu0 0.0
    %385 = vmatpush1.msra.mxu0 0.0
    %386 = vmatprep.mubr.f32.mxu0 0.0
    %387 = vmatmul.mubr.f32.gmra.mrb[0].mxu0 %v321
    %v388 = vpop.f32.mrb[0].mxu0
    %v389 = vadd.f32 0.0, %v388
    %v390 = vpop.f32.mrb[0].mxu0
    %391 = vdwg.mxu0
    %v392 = vrcp.pop 512.0
    %v393 = vmul.f32 %v389, %v392
    %v394 = vmul.f32 %v393, %v393
    %v396 = vrot.slane %v394, 7
    %v398 = vsub.f32 %v393, %v396
    %v399 = vld [vmem:[%s3] sm:$0x1]
    %v400 = vadd.f32 %v398, 1e-05
    %v401 = vrsqrt.pop %v400
    %v404 = vunpack.c.l.s4 1966171168
    %v405 = vunpack.c.0.s8 %v404
    %v406 = vlaneseq
    %v407 = vshrl.u32 %v406, 7
    %v408 = vsub.s32 %v405, %v407
    %v409 = vrot.slane %v401, %v408
    %v410 = vcombine.high %v409, %v409
    %v412 = vunpack.c.l.s4 1966171168
    %v413 = vunpack.c.0.s8 %v412
    %v414 = vlaneseq
    %v415 = vshrl.u32 %v414, 7
    %v416 = vsub.s32 %v413, %v415
    %v417 = vrot.slane %v410, %v416
    %v419 = vmul.f32 %v399, %v417
    %v420 = vld [vmem:[%s4] sm:$0x1]
    %v421 = vmul.f32 %v393, %v419
    %v422 = vsub.f32 %v420, %v421
    %v424 = vlaneseq
    %v425 = vshrl.u32 %v424, 7
    %v426 = vsub.s32 0, %v425
    %v427 = vrot.slane %v422, %v426
    %v429 = vsel %vm320, %v419, %v427
    %vm430 = vcmask 31744
    %v432 = vsel %vm430, %v429, 0
    %vm434 = vcmask 1043456
    %v436 = vsel %vm434, %v77, 0
    %438 = vmatprep.subr.mxu0 0.0
    %439 = vmatpush1.msra.mxu0 %v436
    %440 = vmatprep.subr.mxu0 0.0
    %441 = vmatpush1.msra.mxu0 0.0
    %442 = vmatprep.subr.mxu0 0.0
    %443 = vmatpush1.msra.mxu0 0.0
    %444 = vmatprep.subr.mxu0 0.0
    %445 = vmatpush1.msra.mxu0 0.0
    %446 = vmatprep.subr.mxu0 0.0
    %447 = vmatpush1.msra.mxu0 0.0
    %448 = vmatprep.subr.mxu0 0.0
    %449 = vmatpush1.msra.mxu0 0.0
    %450 = vmatprep.subr.mxu0 0.0
    %451 = vmatpush1.msra.mxu0 0.0
    %452 = vmatprep.subr.mxu0 0.0
    %453 = vmatpush1.msra.mxu0 0.0
    %454 = vmatprep.subr.mxu0 0.0
    %455 = vmatpush1.msra.mxu0 0.0
    %456 = vmatprep.subr.mxu0 0.0
    %457 = vmatpush1.msra.mxu0 0.0
    %458 = vmatprep.subr.mxu0 0.0
    %459 = vmatpush1.msra.mxu0 0.0
    %460 = vmatprep.subr.mxu0 0.0
    %461 = vmatpush1.msra.mxu0 0.0
    %462 = vmatprep.subr.mxu0 0.0
    %463 = vmatpush1.msra.mxu0 0.0
    %464 = vmatprep.subr.mxu0 0.0
    %465 = vmatpush1.msra.mxu0 0.0
    %466 = vmatprep.subr.mxu0 0.0
    %467 = vmatpush1.msra.mxu0 0.0
    %468 = vmatprep.subr.mxu0 0.0
    %469 = vmatpush1.msra.mxu0 0.0
    %470 = vmatprep.subr.mxu0 0.0
    %471 = vmatpush1.msra.mxu0 0.0
    %472 = vmatprep.subr.mxu0 0.0
    %473 = vmatpush1.msra.mxu0 0.0
    %474 = vmatprep.subr.mxu0 0.0
    %475 = vmatpush1.msra.mxu0 0.0
    %476 = vmatprep.subr.mxu0 0.0
    %477 = vmatpush1.msra.mxu0 0.0
    %478 = vmatprep.subr.mxu0 0.0
    %479 = vmatpush1.msra.mxu0 0.0
    %480 = vmatprep.subr.mxu0 0.0
    %481 = vmatpush1.msra.mxu0 0.0
    %482 = vmatprep.subr.mxu0 0.0
    %483 = vmatpush1.msra.mxu0 0.0
    %484 = vmatprep.subr.mxu0 0.0
    %485 = vmatpush1.msra.mxu0 0.0
    %486 = vmatprep.subr.mxu0 0.0
    %487 = vmatpush1.msra.mxu0 0.0
    %488 = vmatprep.subr.mxu0 0.0
    %489 = vmatpush1.msra.mxu0 0.0
    %490 = vmatprep.subr.mxu0 0.0
    %491 = vmatpush1.msra.mxu0 0.0
    %492 = vmatprep.subr.mxu0 0.0
    %493 = vmatpush1.msra.mxu0 0.0
    %494 = vmatprep.subr.mxu0 0.0
    %495 = vmatpush1.msra.mxu0 0.0
    %496 = vmatprep.subr.mxu0 0.0
    %497 = vmatpush1.msra.mxu0 0.0
    %498 = vmatprep.subr.mxu0 0.0
    %499 = vmatpush1.msra.mxu0 0.0
    %500 = vmatprep.subr.mxu0 0.0
    %501 = vmatpush1.msra.mxu0 0.0
    %502 = vmatprep.mubr.f32.mxu0 0.0
    %503 = vmatmul.mubr.f32.gmra.mrb[0].mxu0 %v432
    %v504 = vpop.f32.mrb[0].mxu0
    %v505 = vadd.f32 0.0, %v504
    %v506 = vpop.f32.mrb[0].mxu0
    %507 = vdwg.mxu0
    %v508 = vlaneseq
    %v509 = vshrl.u32 %v508, 7
    %v510 = vsub.s32 0, %v509
    %v511 = vrot.slane %v505, %v510
    %v512 = vmul.f32 %v296, %v511
    %v513 = vmul.f32 %v301, %v511
    %v514 = vlaneseq
    %v515 = vshrl.u32 %v514, 7
    %v516 = vsub.s32 1, %v515
    %v517 = vrot.slane %v505, %v516
    %v518 = vadd.f32 %v512, %v517
    %v519 = vadd.f32 %v513, %v517
    %v520 = vmax.f32 %v518, 0.0
    %v521 = vmax.f32 %v519, 0.0
    %522 = vst [vmem:[#allocation2 + $0x8] sm:$0xff] %v520
    %523 = vst [vmem:[#allocation2 + $0x20] sm:$0xff] %v521
    %v525 = vrot.slane %v520, 7
    %527 = vst [vmem:[#allocation2] sm:$0xfe] %v525
    %v528 = vrot.slane %v520, 1
    %530 = vst [vmem:[#allocation2 + $0x10] sm:$0x7f] %v528
    %v532 = vrot.slane %v521, 7
    %534 = vst [vmem:[#allocation2 + $0x18] sm:$0xfe] %v532
    %v535 = vrot.slane %v521, 1
    %537 = vst [vmem:[#allocation2 + $0x28] sm:$0x7f] %v535
    %v538 = vld [vmem:[#allocation2] sm:$0xff]
    %v539 = vld [vmem:[#allocation2 + $0x8] sm:$0xff]
    %v540 = vld [vmem:[#allocation2 + $0x10] sm:$0xff]
    %v541 = vld [vmem:[#allocation2 + $0x18] sm:$0xff]
    %v542 = vld [vmem:[#allocation2 + $0x20] sm:$0xff]
    %v543 = vld [vmem:[#allocation2 + $0x28] sm:$0xff]
    %v544 = vld [vmem:[#allocation6] sm:$0xff]
    %v545 = vld [vmem:[#allocation6 + $0x8] sm:$0xff]
    %v546 = vld [vmem:[#allocation6 + $0x10] sm:$0xff]
    %v547 = vld [vmem:[#allocation6 + $0x18] sm:$0xff]
    %v548 = vld [vmem:[#allocation6 + $0x20] sm:$0xff]
    %v549 = vld [vmem:[#allocation6 + $0x28] sm:$0xff]
    %v550 = vld [vmem:[#allocation6 + $0x30] sm:$0xff]
    %v551 = vld [vmem:[#allocation6 + $0x38] sm:$0xff]
    %v552 = vld [vmem:[#allocation6 + $0x40] sm:$0xff]
    %v553 = vld [vmem:[#allocation6 + $0x48] sm:$0xff]
    %v554 = vld [vmem:[#allocation6 + $0x50] sm:$0xff]
    %v555 = vld [vmem:[#allocation6 + $0x58] sm:$0xff]
    %v556 = vld [vmem:[#allocation6 + $0x60] sm:$0xff]
    %v557 = vld [vmem:[#allocation6 + $0x68] sm:$0xff]
    %v558 = vld [vmem:[#allocation6 + $0x70] sm:$0xff]
    %v559 = vld [vmem:[#allocation6 + $0x78] sm:$0xff]
    %v560 = vld [vmem:[#allocation6 + $0x80] sm:$0xff]
    %v561 = vld [vmem:[#allocation6 + $0x88] sm:$0xff]
    %v562 = vld [vmem:[#allocation6 + $0x90] sm:$0xff]
    %v563 = vld [vmem:[#allocation6 + $0x98] sm:$0xff]
    %v564 = vld [vmem:[#allocation6 + $0xa0] sm:$0xff]
    %v565 = vld [vmem:[#allocation6 + $0xa8] sm:$0xff]
    %v566 = vld [vmem:[#allocation6 + $0xb0] sm:$0xff]
    %v567 = vld [vmem:[#allocation6 + $0xb8] sm:$0xff]
    %v568 = vld [vmem:[#allocation6 + $0xc0] sm:$0xff]
    %v569 = vld [vmem:[#allocation6 + $0xc8] sm:$0xff]
    %v570 = vld [vmem:[#allocation6 + $0xd0] sm:$0xff]
    %v571 = vld [vmem:[#allocation6 + $0xd8] sm:$0xff]
    %v572 = vld [vmem:[#allocation6 + $0xe0] sm:$0xff]
    %v573 = vld [vmem:[#allocation6 + $0xe8] sm:$0xff]
    %v574 = vld [vmem:[#allocation6 + $0xf0] sm:$0xff]
    %v575 = vld [vmem:[#allocation6 + $0xf8] sm:$0xff]
    %v576 = vld [vmem:[#allocation6 + $0x100] sm:$0xff]
    %v577 = vld [vmem:[#allocation6 + $0x108] sm:$0xff]
    %v578 = vld [vmem:[#allocation6 + $0x110] sm:$0xff]
    %v579 = vld [vmem:[#allocation6 + $0x118] sm:$0xff]
    %v580 = vld [vmem:[#allocation6 + $0x120] sm:$0xff]
    %v581 = vld [vmem:[#allocation6 + $0x128] sm:$0xff]
    %v582 = vld [vmem:[#allocation6 + $0x130] sm:$0xff]
    %v583 = vld [vmem:[#allocation6 + $0x138] sm:$0xff]
    %v584 = vld [vmem:[#allocation6 + $0x140] sm:$0xff]
    %v585 = vld [vmem:[#allocation6 + $0x148] sm:$0xff]
    %v586 = vld [vmem:[#allocation6 + $0x150] sm:$0xff]
    %v587 = vld [vmem:[#allocation6 + $0x158] sm:$0xff]
    %v588 = vld [vmem:[#allocation6 + $0x160] sm:$0xff]
    %v589 = vld [vmem:[#allocation6 + $0x168] sm:$0xff]
    %v590 = vld [vmem:[#allocation6 + $0x170] sm:$0xff]
    %v591 = vld [vmem:[#allocation6 + $0x178] sm:$0xff]
    %592 = vmatprep.subr.mxu0 0.0
    %593 = vmatpush1.msra.mxu0 %v544
    %594 = vmatprep.subr.mxu0 0.0
    %595 = vmatpush1.msra.mxu0 %v545
    %596 = vmatprep.subr.mxu0 0.0
    %597 = vmatpush1.msra.mxu0 %v546
    %598 = vmatprep.subr.mxu0 0.0
    %599 = vmatpush1.msra.mxu0 %v547
    %600 = vmatprep.subr.mxu0 0.0
    %601 = vmatpush1.msra.mxu0 %v548
    %602 = vmatprep.subr.mxu0 0.0
    %603 = vmatpush1.msra.mxu0 %v549
    %604 = vmatprep.subr.mxu0 0.0
    %605 = vmatpush1.msra.mxu0 %v550
    %606 = vmatprep.subr.mxu0 0.0
    %607 = vmatpush1.msra.mxu0 %v551
    %608 = vmatprep.subr.mxu0 0.0
    %609 = vmatpush1.msra.mxu0 %v552
    %610 = vmatprep.subr.mxu0 0.0
    %611 = vmatpush1.msra.mxu0 %v553
    %612 = vmatprep.subr.mxu0 0.0
    %613 = vmatpush1.msra.mxu0 %v554
    %614 = vmatprep.subr.mxu0 0.0
    %615 = vmatpush1.msra.mxu0 %v555
    %616 = vmatprep.subr.mxu0 0.0
    %617 = vmatpush1.msra.mxu0 %v556
    %618 = vmatprep.subr.mxu0 0.0
    %619 = vmatpush1.msra.mxu0 %v557
    %620 = vmatprep.subr.mxu0 0.0
    %621 = vmatpush1.msra.mxu0 %v558
    %622 = vmatprep.subr.mxu0 0.0
    %623 = vmatpush1.msra.mxu0 %v559
    %624 = vmatprep.subr.mxu0 0.0
    %625 = vmatpush1.msra.mxu0 %v560
    %626 = vmatprep.subr.mxu0 0.0
    %627 = vmatpush1.msra.mxu0 %v561
    %628 = vmatprep.subr.mxu0 0.0
    %629 = vmatpush1.msra.mxu0 %v562
    %630 = vmatprep.subr.mxu0 0.0
    %631 = vmatpush1.msra.mxu0 %v563
    %632 = vmatprep.subr.mxu0 0.0
    %633 = vmatpush1.msra.mxu0 %v564
    %634 = vmatprep.subr.mxu0 0.0
    %635 = vmatpush1.msra.mxu0 %v565
    %636 = vmatprep.subr.mxu0 0.0
    %637 = vmatpush1.msra.mxu0 %v566
    %638 = vmatprep.subr.mxu0 0.0
    %639 = vmatpush1.msra.mxu0 %v567
    %640 = vmatprep.subr.mxu0 0.0
    %641 = vmatpush1.msra.mxu0 %v568
    %642 = vmatprep.subr.mxu0 0.0
    %643 = vmatpush1.msra.mxu0 %v569
    %644 = vmatprep.subr.mxu0 0.0
    %645 = vmatpush1.msra.mxu0 %v570
    %646 = vmatprep.subr.mxu0 0.0
    %647 = vmatpush1.msra.mxu0 %v571
    %648 = vmatprep.subr.mxu0 0.0
    %649 = vmatpush1.msra.mxu0 %v572
    %650 = vmatprep.subr.mxu0 0.0
    %651 = vmatpush1.msra.mxu0 %v573
    %652 = vmatprep.subr.mxu0 0.0
    %653 = vmatpush1.msra.mxu0 %v574
    %654 = vmatprep.subr.mxu0 0.0
    %655 = vmatpush1.msra.mxu0 %v575
    %656 = vmatprep.mubr.f32.mxu0 %v539
    %657 = vmatmul.mubr.f32.gmra.mrb[0].mxu0 %v538
    %v658 = vpop.f32.mrb[0].mxu0
    %v659 = vadd.f32 0.0, %v658
    %v660 = vpop.f32.mrb[0].mxu0
    %661 = vmatprep.mubr.f32.mxu0 %v542
    %662 = vmatmul.mubr.f32.gmra.mrb[0].mxu0 %v541
    %v663 = vpop.f32.mrb[0].mxu0
    %v664 = vadd.f32 0.0, %v663
    %v665 = vpop.f32.mrb[0].mxu0
    %666 = vdwg.mxu0
    %667 = vmatprep.subr.mxu0 0.0
    %668 = vmatpush1.msra.mxu0 %v576
    %669 = vmatprep.subr.mxu0 0.0
    %670 = vmatpush1.msra.mxu0 %v577
    %671 = vmatprep.subr.mxu0 0.0
    %672 = vmatpush1.msra.mxu0 %v578
    %673 = vmatprep.subr.mxu0 0.0
    %674 = vmatpush1.msra.mxu0 %v579
    %675 = vmatprep.subr.mxu0 0.0
    %676 = vmatpush1.msra.mxu0 %v580
    %677 = vmatprep.subr.mxu0 0.0
    %678 = vmatpush1.msra.mxu0 %v581
    %679 = vmatprep.subr.mxu0 0.0
    %680 = vmatpush1.msra.mxu0 %v582
    %681 = vmatprep.subr.mxu0 0.0
    %682 = vmatpush1.msra.mxu0 %v583
    %683 = vmatprep.subr.mxu0 0.0
    %684 = vmatpush1.msra.mxu0 %v584
    %685 = vmatprep.subr.mxu0 0.0
    %686 = vmatpush1.msra.mxu0 %v585
    %687 = vmatprep.subr.mxu0 0.0
    %688 = vmatpush1.msra.mxu0 %v586
    %689 = vmatprep.subr.mxu0 0.0
    %690 = vmatpush1.msra.mxu0 %v587
    %691 = vmatprep.subr.mxu0 0.0
    %692 = vmatpush1.msra.mxu0 %v588
    %693 = vmatprep.subr.mxu0 0.0
    %694 = vmatpush1.msra.mxu0 %v589
    %695 = vmatprep.subr.mxu0 0.0
    %696 = vmatpush1.msra.mxu0 %v590
    %697 = vmatprep.subr.mxu0 0.0
    %698 = vmatpush1.msra.mxu0 %v591
    %699 = vmatprep.subr.mxu0 0.0
    %700 = vmatpush1.msra.mxu0 0.0
    %701 = vmatprep.subr.mxu0 0.0
    %702 = vmatpush1.msra.mxu0 0.0
    %703 = vmatprep.subr.mxu0 0.0
    %704 = vmatpush1.msra.mxu0 0.0
    %705 = vmatprep.subr.mxu0 0.0
    %706 = vmatpush1.msra.mxu0 0.0
    %707 = vmatprep.subr.mxu0 0.0
    %708 = vmatpush1.msra.mxu0 0.0
    %709 = vmatprep.subr.mxu0 0.0
    %710 = vmatpush1.msra.mxu0 0.0
    %711 = vmatprep.subr.mxu0 0.0
    %712 = vmatpush1.msra.mxu0 0.0
    %713 = vmatprep.subr.mxu0 0.0
    %714 = vmatpush1.msra.mxu0 0.0
    %715 = vmatprep.subr.mxu0 0.0
    %716 = vmatpush1.msra.mxu0 0.0
    %717 = vmatprep.subr.mxu0 0.0
    %718 = vmatpush1.msra.mxu0 0.0
    %719 = vmatprep.subr.mxu0 0.0
    %720 = vmatpush1.msra.mxu0 0.0
    %721 = vmatprep.subr.mxu0 0.0
    %722 = vmatpush1.msra.mxu0 0.0
    %723 = vmatprep.subr.mxu0 0.0
    %724 = vmatpush1.msra.mxu0 0.0
    %725 = vmatprep.subr.mxu0 0.0
    %726 = vmatpush1.msra.mxu0 0.0
    %727 = vmatprep.subr.mxu0 0.0
    %728 = vmatpush1.msra.mxu0 0.0
    %729 = vmatprep.subr.mxu0 0.0
    %730 = vmatpush1.msra.mxu0 0.0
    %731 = vmatprep.mubr.f32.mxu0 0.0
    %732 = vmatmul.mubr.f32.gmra.mrb[0].mxu0 %v540
    %v733 = vpop.f32.mrb[0].mxu0
    %v734 = vadd.f32 %v659, %v733
    %v735 = vpop.f32.mrb[0].mxu0
    %736 = vmatprep.mubr.f32.mxu0 0.0
    %737 = vmatmul.mubr.f32.gmra.mrb[0].mxu0 %v543
    %v738 = vpop.f32.mrb[0].mxu0
    %v739 = vadd.f32 %v664, %v738
    %v740 = vpop.f32.mrb[0].mxu0
    %741 = vdwg.mxu0
    %v742 = vadd.f32 %v734, %v739
    %v743 = vrot.slane %v742, 4
    %v744 = vadd.f32 %v742, %v743
    %v745 = vrot.slane %v744, 2
    %v746 = vadd.f32 %v744, %v745
    %v747 = vrot.slane %v746, 1
    %v748 = vadd.f32 %v746, %v747
    %v749 = vmul.f32 %v734, %v734
    %v750 = vmul.f32 %v739, %v739
    %v751 = vadd.f32 %v749, %v750
    %v752 = vrot.slane %v751, 4
    %v753 = vadd.f32 %v751, %v752
    %v754 = vrot.slane %v753, 2
    %v755 = vadd.f32 %v753, %v754
    %v756 = vrot.slane %v755, 1
    %v757 = vadd.f32 %v755, %v756
    %v758 = vsel %vm320, %v748, %v757
    %759 = vmatprep.subr.mxu0 0.0
    %760 = vmatpush1.msra.mxu0 %v61
    %761 = vmatprep.subr.mxu0 0.0
    %762 = vmatpush1.msra.mxu0 %v62
    %763 = vmatprep.subr.mxu0 0.0
    %764 = vmatpush1.msra.mxu0 %v63
    %765 = vmatprep.subr.mxu0 0.0
    %766 = vmatpush1.msra.mxu0 %v64
    %767 = vmatprep.subr.mxu0 0.0
    %768 = vmatpush1.msra.mxu0 %v65
    %769 = vmatprep.subr.mxu0 0.0
    %770 = vmatpush1.msra.mxu0 %v66
    %771 = vmatprep.subr.mxu0 0.0
    %772 = vmatpush1.msra.mxu0 %v67
    %773 = vmatprep.subr.mxu0 0.0
    %774 = vmatpush1.msra.mxu0 %v68
    %775 = vmatprep.subr.mxu0 0.0
    %776 = vmatpush1.msra.mxu0 %v69
    %777 = vmatprep.subr.mxu0 0.0
    %778 = vmatpush1.msra.mxu0 %v70
    %779 = vmatprep.subr.mxu0 0.0
    %780 = vmatpush1.msra.mxu0 %v71
    %781 = vmatprep.subr.mxu0 0.0
    %782 = vmatpush1.msra.mxu0 %v72
    %783 = vmatprep.subr.mxu0 0.0
    %784 = vmatpush1.msra.mxu0 %v73
    %785 = vmatprep.subr.mxu0 0.0
    %786 = vmatpush1.msra.mxu0 %v74
    %787 = vmatprep.subr.mxu0 0.0
    %788 = vmatpush1.msra.mxu0 %v75
    %789 = vmatprep.subr.mxu0 0.0
    %790 = vmatpush1.msra.mxu0 %v76
    %791 = vmatprep.subr.mxu0 0.0
    %792 = vmatpush1.msra.mxu0 0.0
    %793 = vmatprep.subr.mxu0 0.0
    %794 = vmatpush1.msra.mxu0 0.0
    %795 = vmatprep.subr.mxu0 0.0
    %796 = vmatpush1.msra.mxu0 0.0
    %797 = vmatprep.subr.mxu0 0.0
    %798 = vmatpush1.msra.mxu0 0.0
    %799 = vmatprep.subr.mxu0 0.0
    %800 = vmatpush1.msra.mxu0 0.0
    %801 = vmatprep.subr.mxu0 0.0
    %802 = vmatpush1.msra.mxu0 0.0
    %803 = vmatprep.subr.mxu0 0.0
    %804 = vmatpush1.msra.mxu0 0.0
    %805 = vmatprep.subr.mxu0 0.0
    %806 = vmatpush1.msra.mxu0 0.0
    %807 = vmatprep.subr.mxu0 0.0
    %808 = vmatpush1.msra.mxu0 0.0
    %809 = vmatprep.subr.mxu0 0.0
    %810 = vmatpush1.msra.mxu0 0.0
    %811 = vmatprep.subr.mxu0 0.0
    %812 = vmatpush1.msra.mxu0 0.0
    %813 = vmatprep.subr.mxu0 0.0
    %814 = vmatpush1.msra.mxu0 0.0
    %815 = vmatprep.subr.mxu0 0.0
    %816 = vmatpush1.msra.mxu0 0.0
    %817 = vmatprep.subr.mxu0 0.0
    %818 = vmatpush1.msra.mxu0 0.0
    %819 = vmatprep.subr.mxu0 0.0
    %820 = vmatpush1.msra.mxu0 0.0
    %821 = vmatprep.subr.mxu0 0.0
    %822 = vmatpush1.msra.mxu0 0.0
    %823 = vmatprep.mubr.f32.mxu0 0.0
    %824 = vmatmul.mubr.f32.gmra.mrb[0].mxu0 %v758
    %v825 = vpop.f32.mrb[0].mxu0
    %v826 = vadd.f32 0.0, %v825
    %v827 = vpop.f32.mrb[0].mxu0
    %828 = vdwg.mxu0
    %v829 = vmul.f32 %v826, %v392
    %v830 = vmul.f32 %v829, %v829
    %v832 = vrot.slane %v830, 7
    %v834 = vsub.f32 %v829, %v832
    %v835 = vld [vmem:[%s5] sm:$0x1]
    %v836 = vadd.f32 %v834, 1e-05
    %v837 = vrsqrt.pop %v836
    %v840 = vunpack.c.l.s4 1966171168
    %v841 = vunpack.c.0.s8 %v840
    %v842 = vlaneseq
    %v843 = vshrl.u32 %v842, 7
    %v844 = vsub.s32 %v841, %v843
    %v845 = vrot.slane %v837, %v844
    %v846 = vcombine.high %v845, %v845
    %v848 = vunpack.c.l.s4 1966171168
    %v849 = vunpack.c.0.s8 %v848
    %v850 = vlaneseq
    %v851 = vshrl.u32 %v850, 7
    %v852 = vsub.s32 %v849, %v851
    %v853 = vrot.slane %v846, %v852
    %v855 = vmul.f32 %v835, %v853
    %v856 = vld [vmem:[%s6] sm:$0x1]
    %v857 = vmul.f32 %v829, %v855
    %v858 = vsub.f32 %v856, %v857
    %v860 = vlaneseq
    %v861 = vshrl.u32 %v860, 7
    %v862 = vsub.s32 0, %v861
    %v863 = vrot.slane %v858, %v862
    %v865 = vsel %vm320, %v855, %v863
    %v867 = vsel %vm430, %v865, 0
    %869 = vmatprep.subr.mxu0 0.0
    %870 = vmatpush1.msra.mxu0 %v436
    %871 = vmatprep.subr.mxu0 0.0
    %872 = vmatpush1.msra.mxu0 0.0
    %873 = vmatprep.subr.mxu0 0.0
    %874 = vmatpush1.msra.mxu0 0.0
    %875 = vmatprep.subr.mxu0 0.0
    %876 = vmatpush1.msra.mxu0 0.0
    %877 = vmatprep.subr.mxu0 0.0
    %878 = vmatpush1.msra.mxu0 0.0
    %879 = vmatprep.subr.mxu0 0.0
    %880 = vmatpush1.msra.mxu0 0.0
    %881 = vmatprep.subr.mxu0 0.0
    %882 = vmatpush1.msra.mxu0 0.0
    %883 = vmatprep.subr.mxu0 0.0
    %884 = vmatpush1.msra.mxu0 0.0
    %885 = vmatprep.subr.mxu0 0.0
    %886 = vmatpush1.msra.mxu0 0.0
    %887 = vmatprep.subr.mxu0 0.0
    %888 = vmatpush1.msra.mxu0 0.0
    %889 = vmatprep.subr.mxu0 0.0
    %890 = vmatpush1.msra.mxu0 0.0
    %891 = vmatprep.subr.mxu0 0.0
    %892 = vmatpush1.msra.mxu0 0.0
    %893 = vmatprep.subr.mxu0 0.0
    %894 = vmatpush1.msra.mxu0 0.0
    %895 = vmatprep.subr.mxu0 0.0
    %896 = vmatpush1.msra.mxu0 0.0
    %897 = vmatprep.subr.mxu0 0.0
    %898 = vmatpush1.msra.mxu0 0.0
    %899 = vmatprep.subr.mxu0 0.0
    %900 = vmatpush1.msra.mxu0 0.0
    %901 = vmatprep.subr.mxu0 0.0
    %902 = vmatpush1.msra.mxu0 0.0
    %903 = vmatprep.subr.mxu0 0.0
    %904 = vmatpush1.msra.mxu0 0.0
    %905 = vmatprep.subr.mxu0 0.0
    %906 = vmatpush1.msra.mxu0 0.0
    %907 = vmatprep.subr.mxu0 0.0
    %908 = vmatpush1.msra.mxu0 0.0
    %909 = vmatprep.subr.mxu0 0.0
    %910 = vmatpush1.msra.mxu0 0.0
    %911 = vmatprep.subr.mxu0 0.0
    %912 = vmatpush1.msra.mxu0 0.0
    %913 = vmatprep.subr.mxu0 0.0
    %914 = vmatpush1.msra.mxu0 0.0
    %915 = vmatprep.subr.mxu0 0.0
    %916 = vmatpush1.msra.mxu0 0.0
    %917 = vmatprep.subr.mxu0 0.0
    %918 = vmatpush1.msra.mxu0 0.0
    %919 = vmatprep.subr.mxu0 0.0
    %920 = vmatpush1.msra.mxu0 0.0
    %921 = vmatprep.subr.mxu0 0.0
    %922 = vmatpush1.msra.mxu0 0.0
    %923 = vmatprep.subr.mxu0 0.0
    %924 = vmatpush1.msra.mxu0 0.0
    %925 = vmatprep.subr.mxu0 0.0
    %926 = vmatpush1.msra.mxu0 0.0
    %927 = vmatprep.subr.mxu0 0.0
    %928 = vmatpush1.msra.mxu0 0.0
    %929 = vmatprep.subr.mxu0 0.0
    %930 = vmatpush1.msra.mxu0 0.0
    %931 = vmatprep.subr.mxu0 0.0
    %932 = vmatpush1.msra.mxu0 0.0
    %933 = vmatprep.mubr.f32.mxu0 0.0
    %934 = vmatmul.mubr.f32.gmra.mrb[0].mxu0 %v867
    %v935 = vpop.f32.mrb[0].mxu0
    %v936 = vadd.f32 0.0, %v935
    %v937 = vpop.f32.mrb[0].mxu0
    %938 = vdwg.mxu0
    %v939 = vlaneseq
    %v940 = vshrl.u32 %v939, 7
    %v941 = vsub.s32 0, %v940
    %v942 = vrot.slane %v936, %v941
    %v943 = vmul.f32 %v734, %v942
    %v944 = vmul.f32 %v739, %v942
    %v945 = vlaneseq
    %v946 = vshrl.u32 %v945, 7
    %v947 = vsub.s32 1, %v946
    %v948 = vrot.slane %v936, %v947
    %v949 = vadd.f32 %v943, %v948
    %v950 = vadd.f32 %v944, %v948
    %v951 = vadd.f32 %v949, %v82
    %v952 = vadd.f32 %v950, %v83
    %v953 = vmax.f32 %v951, 0.0
    %v954 = vmax.f32 %v952, 0.0
    %955 = vst [vmem:[#allocation8] sm:$0xff] %v953
    %956 = vst [vmem:[#allocation8 + $0x8] sm:$0xff] %v954
    // Predicated region
    $region46: #{tpu_custom_call.1} parent=1 // pred_check
      _
    $region47: #{tpu_custom_call.1} parent=1 // pred_check_branch
      %958 = sbr.rel (0) target = $region49
    $region48: #{tpu_custom_call.1} parent=1 // pred_region
      %s960 = ssub.s32 256, 256
      %961 = vsyncadd [#allocation5], %s960
      %s962 = sshll.u32 [#allocation8], 4
      %s963 = int_to_ptr.vmem [resolvable:$true] %s962
      %968 = dma.vmem_to_hbm [thread:$0]  %s963, 256, %s9, [#allocation5], 128, 128, 8
    $region49: #{tpu_custom_call.1} parent=1 // pred_fallthru
      _
    // Predicated region
    $region50: #{tpu_custom_call.1} parent=1 // pred_check
      _
    $region51: #{tpu_custom_call.1} parent=1 // pred_check_branch
      %970 = sbr.rel (0) target = $region53
    $region52: #{tpu_custom_call.1} parent=1 // pred_region
      %971 = dma.done [#allocation5], 256
    $region53: #{tpu_custom_call.1} parent=1 // pred_fallthru
      _
    %972 = vsyncpa [#allocation4], 1
    %973 = vsyncpa [#allocation7], 1
    %974 = vsyncpa [#allocation5], 1

</llo_original>
